<compile_context>
chip_gen: v7x
topology: tpu7x:2x2x1
jax: 0.10.0
libtpu: 0.0.40
codegen_flags: <defaults>
</compile_context>

<pallas_src>
import math

import jax
import jax.numpy as jnp
from jax.experimental import pallas as pl
from jax.experimental.pallas import tpu as pltpu


_LANES = 128
_EPS = 1e-5


def _round_up(x, m):
    return ((x + m - 1) // m) * m


def _cdiv(a, b):
    return (a + b - 1) // b


def _gelu_exact(x):
    # PyTorch nn.GELU() default: exact erf-based GELU (f32).
    return 0.5 * x * (1.0 + jax.lax.erf(x * (1.0 / math.sqrt(2.0))))


# ----------------------------- Pallas kernels ------------------------------ #

def _make_l0_stats_kernel(tile, cpad, t_valid):
    """Layer-0 pass 1: accumulate per-channel sum / sum-of-squares of conv(x)."""

    def kernel(p_ref, w_ref, sum_ref, sq_ref):
        t = pl.program_id(1)

        @pl.when(t == 0)
        def _():
            sum_ref[...] = jnp.zeros_like(sum_ref)
            sq_ref[...] = jnp.zeros_like(sq_ref)

        y = jnp.dot(p_ref[0], w_ref[...], preferred_element_type=jnp.float32)
        rows = t * tile + jax.lax.broadcasted_iota(jnp.int32, (tile, 1), 0)
        y = jnp.where(rows < t_valid, y, 0.0)                  # mask padded rows
        s1 = jnp.sum(y, axis=0, keepdims=True)                 # (1, cpad)
        s2 = jnp.sum(y * y, axis=0, keepdims=True)
        sum_ref[0] += s1                                       # broadcast to (8, cpad)
        sq_ref[0] += s2

    return kernel


def _make_l0_apply_kernel(tile, cpad, t_valid):
    """Layer-0 pass 2: conv (recomputed, cheap) + GroupNorm + affine + GELU."""
    inv_n = 1.0 / float(t_valid)

    def kernel(p_ref, w_ref, sum_ref, sq_ref, g_ref, b_ref, o_ref):
        t = pl.program_id(1)
        y = jnp.dot(p_ref[0], w_ref[...], preferred_element_type=jnp.float32)
        sums = sum_ref[0]                                      # (8, cpad)
        sqs = sq_ref[0]
        mean = sums[0:1, :] * inv_n                            # (1, cpad)
        var = sqs[0:1, :] * inv_n - mean * mean                # biased variance
        y = (y - mean) * jax.lax.rsqrt(var + _EPS)
        y = y * g_ref[...] + b_ref[...]
        y = _gelu_exact(y)
        rows = t * tile + jax.lax.broadcasted_iota(jnp.int32, (tile, 1), 0)
        y = jnp.where(rows < t_valid, y, 0.0)                  # keep padding exactly 0
        o_ref[0] = y.astype(o_ref.dtype)

    return kernel


def _make_deep_kernel(tile, cpad_out, q_taps, halo, t_valid):
    """Conv (tap-summed polyphase matmuls) + GELU for layers >= 1."""

    def kernel_halo(x_ref, h_ref, w_ref, o_ref, xbuf):
        t = pl.program_id(1)
        # Assemble the main tile + (Q-1)-row halo into one contiguous buffer.
        xbuf[0:tile, :] = x_ref[0]
        xbuf[tile:tile + halo, :] = h_ref[0, 0]
        acc = jnp.zeros((tile, cpad_out), jnp.float32)
        for q in range(q_taps):                                # static, Q small
            acc = acc + jnp.dot(xbuf[q:q + tile, :], w_ref[q],
                                preferred_element_type=jnp.float32)
        y = _gelu_exact(acc)
        rows = t * tile + jax.lax.broadcasted_iota(jnp.int32, (tile, 1), 0)
        y = jnp.where(rows < t_valid, y, 0.0)
        o_ref[0] = y.astype(o_ref.dtype)

    def kernel_nohalo(x_ref, w_ref, o_ref):
        t = pl.program_id(1)
        acc = jnp.dot(x_ref[0], w_ref[0], preferred_element_type=jnp.float32)
        y = _gelu_exact(acc)
        rows = t * tile + jax.lax.broadcasted_iota(jnp.int32, (tile, 1), 0)
        y = jnp.where(rows < t_valid, y, 0.0)
        o_ref[0] = y.astype(o_ref.dtype)

    return kernel_halo if halo > 0 else kernel_nohalo


# ------------------------------- model wrapper ------------------------------ #

class Conv2DFeatureExtractionModelPallas:
    """JAX/Pallas equivalent of Conv2DFeatureExtractionModel (mode='default')."""

    def __init__(self, dim_input, conv_layers, mode="default", conv_bias=False,
                 seed=0, time_tile=512, compute_dtype=jnp.float32,
                 vmem_limit_bytes=None):
        assert mode == "default"
        assert not conv_bias  # TODO(synk): conv bias path unused in default fairseq config
        assert time_tile % 8 == 0
        self.dim_input = dim_input
        self.time_tile = int(time_tile)        # v5e/v6e: 512-1024 rows; v7x: <=512 (64 MiB VMEM)
        self.compute_dtype = compute_dtype     # set jnp.bfloat16 for 2x MXU/DMA on v6e/v7x
        self.vmem_limit_bytes = vmem_limit_bytes

        key = jax.random.PRNGKey(seed)
        self.layers = []
        in_d = dim_input
        for i, (dim, k, stride) in enumerate(conv_layers):
            key, wkey = jax.random.split(key)
            fan_in = in_d * k
            std = math.sqrt(2.0 / fan_in)      # kaiming_normal_, fan_in, leaky_relu(a=0)
            w = jax.random.normal(wkey, (dim, in_d, k), dtype=jnp.float32) * std
            if i == 0:                         # group norm only on first layer (mode='default')
                gamma = jnp.ones((dim,), jnp.float32)
                beta = jnp.zeros((dim,), jnp.float32)
            else:
                gamma, beta = None, None
            self.layers.append(dict(w=w, gamma=gamma, beta=beta,
                                    k=k, stride=stride, c_in=in_d, c_out=dim))
            in_d = dim
        self._pack_params()

    # --- parameter packing (channel padding to lane-dense multiples of 128) --- #
    def _pack_params(self):
        cd = self.compute_dtype
        for i, lyr in enumerate(self.layers):
            c_in, c_out, k, s = lyr["c_in"], lyr["c_out"], lyr["k"], lyr["stride"]
            cpad_in = c_in if i == 0 else _round_up(c_in, _LANES)
            cpad_out = _round_up(c_out, _LANES)
            lyr["cpad_in"], lyr["cpad_out"] = cpad_in, cpad_out
            if i == 0:
                # (C_in*k, Cpad_out) matmul form for the (tiny) im2col'd first layer.
                w2d = jnp.zeros((c_in * k, cpad_out), jnp.float32)
                w2d = w2d.at[:, :c_out].set(
                    jnp.transpose(lyr["w"], (1, 2, 0)).reshape(c_in * k, c_out))
                lyr["w_packed"] = w2d.astype(cd)
                g = jnp.zeros((1, cpad_out), jnp.float32).at[0, :c_out].set(lyr["gamma"])
                b = jnp.zeros((1, cpad_out), jnp.float32).at[0, :c_out].set(lyr["beta"])
                lyr["gamma_packed"], lyr["beta_packed"] = g, b
            else:
                q_taps = _cdiv(k, s)
                halo = q_taps - 1
                assert halo <= 8
                lyr["q_taps"], lyr["halo"] = q_taps, halo
                # Polyphase weight: wr[q, r*Cpad_in + c, o] = W[o, c, q*s + r]
                wr = jnp.zeros((q_taps, s * cpad_in, cpad_out), jnp.float32)
                for q in range(q_taps):
                    for r in range(s):
                        tap = q * s + r
                        if tap < k:
                            wr = wr.at[q, r * cpad_in:r * cpad_in + c_in, :c_out].set(
                                lyr["w"][:, :, tap].T)
                lyr["w_packed"] = wr.astype(cd)

    # --- static planning: time-tile counts per layer (padding stays zero) --- #
    def _plan(self, t_in):
        tile = self.time_tile
        t_outs = []
        t = t_in
        for lyr in self.layers:
            t = (t - lyr["k"]) // lyr["stride"] + 1
            assert t >= 1, "input sequence too short for conv stack"
            t_outs.append(t)
        n = len(self.layers)
        grids = [0] * n
        grids[n - 1] = _cdiv(t_outs[n - 1], tile)
        for i in range(n - 2, -1, -1):
            s_next = self.layers[i + 1]["stride"]
            need_rows = s_next * grids[i + 1] * tile     # rows required as next layer's input
            g = max(_cdiv(t_outs[i], tile), _cdiv(need_rows, tile))
            while (g * tile) % s_next != 0:              # polyphase divisibility
                g += 1
            grids[i] = g
        return t_outs, grids

    def _compiler_params(self, dims):
        kw = dict(dimension_semantics=dims)
        if self.vmem_limit_bytes is not None:
            kw["vmem_limit_bytes"] = int(self.vmem_limit_bytes)
        return pltpu.CompilerParams(**kw)

    # ------------------------------ layer 0 ------------------------------ #
    def _layer0_forward(self, x_ncl, t_out, grid_t):
        lyr = self.layers[0]
        tile, cd = self.time_tile, self.compute_dtype
        B, c_in, t_in = x_ncl.shape
        k, s = lyr["k"], lyr["stride"]
        cpad = lyr["cpad_out"]
        rows = grid_t * tile
        ck = c_in * k

        # im2col only for layer 0 (C_in is 1 for raw audio -> patches are tiny
        # relative to the layer-0 output).  Rows beyond t_out are zero-filled.
        t_idx = jnp.arange(rows)[:, None] * s + jnp.arange(k)[None, :]
        valid = t_idx < t_in
        t_idx = jnp.minimum(t_idx, t_in - 1)
        patches = jnp.take(x_ncl, t_idx, axis=2)                     # (B, c_in, rows, k)
        patches = jnp.where(valid[None, None, :, :], patches, 0.0)
        patches = jnp.transpose(patches, (0, 2, 1, 3)).reshape(B, rows, ck).astype(cd)
        w2d = lyr["w_packed"]

        # Pass 1: per-(batch, channel) sum / sum-of-squares, accumulated over
        # the time-tile grid axis ("arbitrary"), batch axis "parallel".
        sums, sqs = pl.pallas_call(
            _make_l0_stats_kernel(tile, cpad, t_out),
            out_shape=(jax.ShapeDtypeStruct((B, 8, cpad), jnp.float32),
                       jax.ShapeDtypeStruct((B, 8, cpad), jnp.float32)),
            grid=(B, grid_t),
            in_specs=[pl.BlockSpec((1, tile, ck), lambda b, t: (b, t, 0)),
                      pl.BlockSpec((ck, cpad), lambda b, t: (0, 0))],
            out_specs=(pl.BlockSpec((1, 8, cpad), lambda b, t: (b, 0, 0)),
                       pl.BlockSpec((1, 8, cpad), lambda b, t: (b, 0, 0))),
            compiler_params=self._compiler_params(("parallel", "arbitrary")),
        )(patches, w2d)

        # Pass 2: conv (recomputed) + GroupNorm + GELU, fully parallel grid.
        out = pl.pallas_call(
            _make_l0_apply_kernel(tile, cpad, t_out),
            out_shape=jax.ShapeDtypeStruct((B, rows, cpad), cd),
            grid=(B, grid_t),
            in_specs=[pl.BlockSpec((1, tile, ck), lambda b, t: (b, t, 0)),
                      pl.BlockSpec((ck, cpad), lambda b, t: (0, 0)),
                      pl.BlockSpec((1, 8, cpad), lambda b, t: (b, 0, 0)),
                      pl.BlockSpec((1, 8, cpad), lambda b, t: (b, 0, 0)),
                      pl.BlockSpec((1, cpad), lambda b, t: (0, 0)),
                      pl.BlockSpec((1, cpad), lambda b, t: (0, 0))],
            out_specs=pl.BlockSpec((1, tile, cpad), lambda b, t: (b, t, 0)),
            compiler_params=self._compiler_params(("parallel", "parallel")),
        )(patches, w2d, sums, sqs, lyr["gamma_packed"], lyr["beta_packed"])
        return out

    # ---------------------------- layers >= 1 ---------------------------- #
    def _deep_forward(self, x, layer_idx, t_out, grid_t):
        lyr = self.layers[layer_idx]
        tile, cd = self.time_tile, self.compute_dtype
        B, rows_in, cpad_in = x.shape
        s = lyr["stride"]
        cpad_out = lyr["cpad_out"]
        q_taps, halo = lyr["q_taps"], lyr["halo"]
        sc = s * cpad_in

        # Polyphase view: (B, rows, Cpad) -> (B, rows//s, s*Cpad) so the conv is
        # a sum of Q shifted dense matmuls (no k-fold im2col expansion).
        # TODO(synk): this reshape may still materialize one copy under XLA's
        # tiled TPU layouts; it could be folded into the producer's out spec.
        assert rows_in % s == 0
        x_r = x.reshape(B, rows_in // s, sc)
        x_rows = rows_in // s
        assert x_rows >= grid_t * tile
        wr = lyr["w_packed"]
        kernel = _make_deep_kernel(tile, cpad_out, q_taps, halo, t_out)

        if halo > 0:
            # Tiny per-tile halo: the (Q-1) polyphase rows following each tile.
            h_idx = (jnp.arange(grid_t)[:, None] + 1) * tile + jnp.arange(halo)[None, :]
            h_valid = h_idx < x_rows
            h_idx = jnp.minimum(h_idx, x_rows - 1)
            halo_arr = jnp.take(x_r, h_idx, axis=1)                  # (B, grid_t, halo, sc)
            halo_arr = jnp.where(h_valid[None, :, :, None], halo_arr,
                                 jnp.zeros((), cd))
            in_specs = [pl.BlockSpec((1, tile, sc), lambda b, t: (b, t, 0)),
                        pl.BlockSpec((1, 1, halo, sc), lambda b, t: (b, t, 0, 0)),
                        pl.BlockSpec((q_taps, sc, cpad_out), lambda b, t: (0, 0, 0))]
            args = (x_r, halo_arr, wr)
            scratch = [pltpu.VMEM((tile + 8, sc), cd)]
        else:
            in_specs = [pl.BlockSpec((1, tile, sc), lambda b, t: (b, t, 0)),
                        pl.BlockSpec((q_taps, sc, cpad_out), lambda b, t: (0, 0, 0))]
            args = (x_r, wr)
            scratch = []

        out = pl.pallas_call(
            kernel,
            out_shape=jax.ShapeDtypeStruct((B, grid_t * tile, cpad_out), cd),
            grid=(B, grid_t),
            in_specs=in_specs,
            out_specs=pl.BlockSpec((1, tile, cpad_out), lambda b, t: (b, t, 0)),
            scratch_shapes=scratch,
            compiler_params=self._compiler_params(("parallel", "parallel")),
        )(*args)
        return out

    # ------------------------------ forward ------------------------------ #
    def __call__(self, x):
        if x.ndim == 2:
            x = x[:, None, :]                  # (B, T) -> (B, 1, T)
        elif x.ndim != 3:
            raise NotImplementedError("error input ndim")
        assert x.shape[1] == self.dim_input
        B, _, t_in = x.shape
        t_outs, grids = self._plan(t_in)

        h = self._layer0_forward(x.astype(jnp.float32), t_outs[0], grids[0])
        for i in range(1, len(self.layers)):
            h = self._deep_forward(h, i, t_outs[i], grids[i])

        # Back to the PyTorch NCL layout, dropping time/channel padding.
        c_last = self.layers[-1]["c_out"]
        h = h[:, :t_outs[-1], :c_last].astype(jnp.float32)
        return jnp.transpose(h, (0, 2, 1))

    # Pure-JAX reference for verification (mirrors the PyTorch forward).
    def reference(self, x):
        if x.ndim == 2:
            x = x[:, None, :]
        x = x.astype(jnp.float32)
        for lyr in self.layers:
            y = jax.lax.conv_general_dilated(
                x, lyr["w"], window_strides=(lyr["stride"],), padding="VALID",
                dimension_numbers=("NCH", "OIH", "NCH"))
            if lyr["gamma"] is not None:
                mean = jnp.mean(y, axis=2, keepdims=True)
                var = jnp.mean((y - mean) ** 2, axis=2, keepdims=True)
                y = (y - mean) / jnp.sqrt(var + _EPS)
                y = y * lyr["gamma"][None, :, None] + lyr["beta"][None, :, None]
            x = _gelu_exact(y)
        return x


if __name__ == "__main__":
    key = jax.random.PRNGKey(0)
    B, T = 2, 2048
    # (dim, kernel, stride) per layer; exercises GN layer, Q=2 and Q=1 deep layers.
    conv_layer_cfg = [(32, 8, 4), (48, 4, 2), (64, 2, 2)]

    x = jax.random.normal(key, (B, T), dtype=jnp.float32)       # raw waveform (B, T)

    model = Conv2DFeatureExtractionModelPallas(
        dim_input=1, conv_layers=conv_layer_cfg, mode="default", conv_bias=False,
        seed=0, time_tile=128, compute_dtype=jnp.float32)

    out = jax.block_until_ready(model(x))
    ref = jax.block_until_ready(model.reference(x))
    assert out.shape == ref.shape, (out.shape, ref.shape)
    err = float(jnp.max(jnp.abs(out - ref)))
    assert jnp.allclose(out, ref, atol=2e-3, rtol=2e-3), err

    print("KERNEL_OK")
</pallas_src>

<mosaic_0001>
module attributes {stable_mosaic.version = 11 : i64} {
  func.func @kernel(%arg0: i32, %arg1: i32, %arg2: memref<1x128x8xf32, #tpu.memory_space<vmem>>, %arg3: memref<8x128xf32, #tpu.memory_space<vmem>>, %arg4: memref<1x8x128xf32, #tpu.memory_space<vmem>>, %arg5: memref<1x8x128xf32, #tpu.memory_space<vmem>>) attributes {dimension_semantics = [#tpu.dimension_semantics<parallel>, #tpu.dimension_semantics<arbitrary>], iteration_bounds = array<i64: 2, 4>, scalar_prefetch = 0 : i64, scratch_operands = 0 : i64, tpu.core_type = #tpu.core_type<tc>, window_params = [{transform_indices = @transform_0, window_bounds = array<i64: 1, 128, 8>}, {pipeline_mode = #tpu.pipeline_mode<synchronous>, transform_indices = @transform_1, window_bounds = array<i64: 8, 128>}, {transform_indices = @transform_2, window_bounds = array<i64: 1, 8, 128>}, {transform_indices = @transform_3, window_bounds = array<i64: 1, 8, 128>}]} {
    %c0_i32 = arith.constant 0 : i32
    %0 = arith.cmpi eq, %arg1, %c0_i32 : i32
    %1 = arith.extui %0 : i1 to i32
    %c0_i32_0 = arith.constant 0 : i32
    %2 = arith.cmpi ne, %1, %c0_i32_0 : i32
    scf.if %2 {
      %cst_20 = arith.constant 0.000000e+00 : f32
      %36 = vector.broadcast %cst_20 : f32 to vector<1x8x128xf32>
      %c0_21 = arith.constant 0 : index
      %c0_22 = arith.constant 0 : index
      %c0_23 = arith.constant 0 : index
      %37 = vector.load %arg4[%c0_21, %c0_22, %c0_23] : memref<1x8x128xf32, #tpu.memory_space<vmem>>, vector<1x8x128xf32>
      tpu.vector_store %arg4[%c0_21, %c0_22, %c0_23], %36 {strides = array<i32>} : memref<1x8x128xf32, #tpu.memory_space<vmem>>, vector<1x8x128xf32>,
      %cst_24 = arith.constant 0.000000e+00 : f32
      %38 = vector.broadcast %cst_24 : f32 to vector<1x8x128xf32>
      %c0_25 = arith.constant 0 : index
      %c0_26 = arith.constant 0 : index
      %c0_27 = arith.constant 0 : index
      %39 = vector.load %arg5[%c0_25, %c0_26, %c0_27] : memref<1x8x128xf32, #tpu.memory_space<vmem>>, vector<1x8x128xf32>
      tpu.vector_store %arg5[%c0_25, %c0_26, %c0_27], %38 {strides = array<i32>} : memref<1x8x128xf32, #tpu.memory_space<vmem>>, vector<1x8x128xf32>,
    } else {
    }
    %c0 = arith.constant 0 : index
    %c0_1 = arith.constant 0 : index
    %c0_2 = arith.constant 0 : index
    %3 = vector.load %arg2[%c0, %c0_1, %c0_2] : memref<1x128x8xf32, #tpu.memory_space<vmem>>, vector<1x128x8xf32>
    %4 = vector.shape_cast %3 : vector<1x128x8xf32> to vector<128x8xf32>
    %c0_3 = arith.constant 0 : index
    %c0_4 = arith.constant 0 : index
    %5 = vector.load %arg3[%c0_3, %c0_4] : memref<8x128xf32, #tpu.memory_space<vmem>>, vector<8x128xf32>
    %cst = arith.constant dense<0.000000e+00> : vector<128x128xf32>
    %6 = tpu.matmul %4, %5, %cst {dimension_numbers = #tpu.dot_dimension_numbers<[1], [0], [0], [1], [0, 0, 1, 1], [], []>} : vector<128x8xf32>, vector<8x128xf32>, vector<128x128xf32> -> vector<128x128xf32>
    %c128_i32 = arith.constant 128 : i32
    %7 = arith.muli %arg1, %c128_i32 : i32
    %8 = tpu.iota {dimensions = array<i32: 0>} : vector<128x1xi32>
    %9 = vector.broadcast %7 : i32 to vector<128x1xi32>
    %10 = arith.addi %9, %8 : vector<128x1xi32>
    %c511_i32 = arith.constant 511 : i32
    %11 = vector.broadcast %c511_i32 : i32 to vector<128x1xi32>
    %12 = arith.cmpi slt, %10, %11 : vector<128x1xi32>
    %cst_5 = arith.constant 0.000000e+00 : f32
    %13 = vector.shape_cast %12 : vector<128x1xi1> to vector<128x1xi1>
    %14 = vector.broadcast %13 : vector<128x1xi1> to vector<128x128xi1>
    %15 = vector.broadcast %cst_5 : f32 to vector<128x128xf32>
    %16 = arith.select %14, %6, %15 : vector<128x128xi1>, vector<128x128xf32>
    %cst_6 = arith.constant dense<0.000000e+00> : vector<128xf32>
    %17 = vector.multi_reduction <add>, %16, %cst_6 [0] : vector<128x128xf32> to vector<128xf32>
    %18 = vector.shape_cast %17 : vector<128xf32> to vector<1x128xf32>
    %19 = arith.mulf %16, %16 : vector<128x128xf32>
    %cst_7 = arith.constant dense<0.000000e+00> : vector<128xf32>
    %20 = vector.multi_reduction <add>, %19, %cst_7 [0] : vector<128x128xf32> to vector<128xf32>
    %21 = vector.shape_cast %20 : vector<128xf32> to vector<1x128xf32>
    %c0_8 = arith.constant 0 : index
    %c0_9 = arith.constant 0 : index
    %c0_10 = arith.constant 0 : index
    %22 = vector.load %arg4[%c0_8, %c0_9, %c0_10] : memref<1x8x128xf32, #tpu.memory_space<vmem>>, vector<1x8x128xf32>
    %23 = vector.shape_cast %22 : vector<1x8x128xf32> to vector<8x128xf32>
    %24 = vector.broadcast %18 : vector<1x128xf32> to vector<8x128xf32>
    %25 = arith.addf %23, %24 : vector<8x128xf32>
    %c0_11 = arith.constant 0 : index
    %c0_12 = arith.constant 0 : index
    %c0_13 = arith.constant 0 : index
    %26 = vector.load %arg4[%c0_11, %c0_12, %c0_13] : memref<1x8x128xf32, #tpu.memory_space<vmem>>, vector<1x8x128xf32>
    %27 = vector.shape_cast %26 : vector<1x8x128xf32> to vector<8x128xf32>
    %28 = vector.shape_cast %25 : vector<8x128xf32> to vector<1x8x128xf32>
    tpu.vector_store %arg4[%c0_11, %c0_12, %c0_13], %28 {strides = array<i32>} : memref<1x8x128xf32, #tpu.memory_space<vmem>>, vector<1x8x128xf32>,
    %c0_14 = arith.constant 0 : index
    %c0_15 = arith.constant 0 : index
    %c0_16 = arith.constant 0 : index
    %29 = vector.load %arg5[%c0_14, %c0_15, %c0_16] : memref<1x8x128xf32, #tpu.memory_space<vmem>>, vector<1x8x128xf32>
    %30 = vector.shape_cast %29 : vector<1x8x128xf32> to vector<8x128xf32>
    %31 = vector.broadcast %21 : vector<1x128xf32> to vector<8x128xf32>
    %32 = arith.addf %30, %31 : vector<8x128xf32>
    %c0_17 = arith.constant 0 : index
    %c0_18 = arith.constant 0 : index
    %c0_19 = arith.constant 0 : index
    %33 = vector.load %arg5[%c0_17, %c0_18, %c0_19] : memref<1x8x128xf32, #tpu.memory_space<vmem>>, vector<1x8x128xf32>
    %34 = vector.shape_cast %33 : vector<1x8x128xf32> to vector<8x128xf32>
    %35 = vector.shape_cast %32 : vector<8x128xf32> to vector<1x8x128xf32>
    tpu.vector_store %arg5[%c0_17, %c0_18, %c0_19], %35 {strides = array<i32>} : memref<1x8x128xf32, #tpu.memory_space<vmem>>, vector<1x8x128xf32>,
    return
  }
  func.func @transform_0(%arg0: i32, %arg1: i32) -> (i32, i32, i32) {
    %c0_i32 = arith.constant 0 : i32
    %c0_i32_0 = arith.constant 0 : i32
    return %arg0, %arg1, %c0_i32 : i32, i32, i32
  }
  func.func @transform_1(%arg0: i32, %arg1: i32) -> (i32, i32) {
    %c0_i32 = arith.constant 0 : i32
    %c0_i32_0 = arith.constant 0 : i32
    %c0_i32_1 = arith.constant 0 : i32
    return %c0_i32, %c0_i32_0 : i32, i32
  }
  func.func @transform_2(%arg0: i32, %arg1: i32) -> (i32, i32, i32) {
    %c0_i32 = arith.constant 0 : i32
    %c0_i32_0 = arith.constant 0 : i32
    %c0_i32_1 = arith.constant 0 : i32
    return %arg0, %c0_i32, %c0_i32_0 : i32, i32, i32
  }
  func.func @transform_3(%arg0: i32, %arg1: i32) -> (i32, i32, i32) {
    %c0_i32 = arith.constant 0 : i32
    %c0_i32_0 = arith.constant 0 : i32
    %c0_i32_1 = arith.constant 0 : i32
    return %arg0, %c0_i32, %c0_i32_0 : i32, i32, i32
  }
}

</mosaic_0001>

<llo_original>
// kernel: tpu_custom_call.1
$region0: #{tpu_custom_call.1}
  #allocation0 [shape = 'u32[]', space=smem, size = 0x4, offset = 0x4, fixed_abs, tag = 'smem constant byte address 0x4 - core index']
  #allocation1 [shape = 'u32[144,128]{1,0:T(1,128)}', space=vmem, size = 0x12000, scoped, tag = 'internal scratch']
  %s0 = inlined_call_operand.vmem [shape: f32[2,512,8], index: 0, kind: input, shape index: {}]
  %s1 = inlined_call_operand.vmem [shape: f32[8,128], index: 1, kind: input, shape index: {}]
  %s2 = inlined_call_operand.hbm [shape: f32[2,8,128], index: 2, kind: output, shape index: {0}]
  %s3 = inlined_call_operand.hbm [shape: f32[2,8,128], index: 3, kind: output, shape index: {1}]
  %4 = xla_tuple %s2, %s3
  %s5 = sld [smem:[#allocation0]]
  $region53: #{tpu_custom_call.1} parent=0
    _
  %s7 = ssub.s32 1, %s5
  %s8 = scalar_select 0, %s7, %s5
  $region1: #{tpu_custom_call.1} parent=0
    #allocation2 [shape = 'u8[8192]{0}', space=vmem, size = 0x2000, scoped, tag = 'output window, operand 0']
    #allocation3 [shape = 's32[2]{0}', space=sflag, size = 0x8, scoped, tag = 'scoped memory for tpu_custom_call.1']
    #allocation4 [shape = 'u8[8192]{0}', space=vmem, size = 0x2000, scoped, tag = 'output window, operand 1']
    #allocation5 [shape = 's32[2]{0}', space=sflag, size = 0x8, scoped, tag = 'scoped memory for tpu_custom_call.1']
    %9 = vsyncpa [#allocation3], 0
    %s10 = scalar_lea.sflag [#allocation3], 1
    %11 = vsyncpa %s10, 0
    %12 = vsyncpa [#allocation5], 0
    %s13 = scalar_lea.sflag [#allocation5], 1
    %14 = vsyncpa %s13, 0
    loop: start=0, step=1, limit=10
    $region2: #{tpu_custom_call.1} parent=1 // loop_pre_header
      _
    $region3: #{tpu_custom_call.1} parent=1 // loop_header
      %s16 = sphi 0, %s20
      %p17 = scmp.ge.s32.totalorder %s16, 10
      %s23 = sphi 0, %s35
      %s24 = sphi 0, %s31
      %s25 = sphi 0, %s23
      %s26 = sphi 0, %s24
      %s27 = sphi 0, %s25
      %s28 = sphi 0, %s26
      %s40 = sphi 0, %s42
      %s43 = sphi 0, %s40
      %s44 = sphi 0, %s43
      %s60 = sphi 0, %s44
      %s64 = sphi 0, %s64
      %s66 = sphi 0, %s64
      %s67 = sphi 0, %s66
      %s81 = sphi 0, %s67
      %s87 = sphi 0, %s89
      %s90 = sphi 0, %s87
      %s91 = sphi 0, %s90
      %s107 = sphi 0, %s91
      %s113 = sphi 0, %s115
      %s116 = sphi 0, %s113
      %s117 = sphi 0, %s116
      %s133 = sphi 0, %s117
    $region4: #{tpu_custom_call.1} parent=1 // loop_header_branch
      %19 = sbr.rel (%p17) target = $region8
    $region5: #{tpu_custom_call.1} parent=1 // loop_body
      %s21 = ssub.s32 %s16, 1
      %s22 = ssub.s32 %s16, 2
      %s29 = sadd.s32 1, %s24
      %p30 = scmp.ge.s32.totalorder %s29, 4
      %s31 = scalar_select %p30, 0, %s29
      %s32 = sadd.s32 1, %s23
      %s33 = scalar_select %p30, %s32, %s23
      %p34 = scmp.ge.s32.totalorder %s33, 2
      %s35 = scalar_select %p34, 0, %s33
      %s36 = ssub.s32 %s23, %s35
      %s37 = ssub.s32 %s24, %s31
      %s38 = sor.u32 %s36, %s37
      %p39 = scmp.eq.s32.totalorder %s38, 0
      %s41 = sadd.s32 %s40, 1
      %s42 = scalar_select %p39, %s40, %s41
      %p45 = pneg %p39
      %p46 = scmp.eq.s32.totalorder %s16, 7
      %p47 = por %p45, %p46
      %p48 = scmp.ne.s32.totalorder %s40, %s43
      %p49 = scmp.eq.s32.totalorder %s16, 0
      %p50 = por %p48, %p49
      %p51 = scmp.ne.s32.totalorder %s40, %s43
      %p52 = scmp.eq.s32.totalorder %s21, 7
      %p53 = por %p51, %p52
      %p54 = scmp.ne.s32.totalorder %s43, %s44
      %p55 = scmp.eq.s32.totalorder %s21, 0
      %p56 = por %p54, %p55
      %p57 = scmp.ne.s32.totalorder %s43, %s44
      %p58 = scmp.eq.s32.totalorder %s22, 7
      %p59 = por %p57, %p58
      %p61 = scmp.ne.s32.totalorder %s44, %s60
      %p62 = scmp.eq.s32.totalorder %s22, 0
      %p63 = por %p61, %p62
      %s65 = sadd.s32 %s64, 1
      %p68 = scmp.eq.s32.totalorder %s16, 7
      %p69 = scmp.ne.s32.totalorder %s64, %s66
      %p70 = scmp.eq.s32.totalorder %s16, 0
      %p71 = por %p69, %p70
      %p72 = scmp.ne.s32.totalorder %s64, %s66
      %p73 = scmp.eq.s32.totalorder %s21, 7
      %p74 = por %p72, %p73
      %p75 = scmp.ne.s32.totalorder %s66, %s67
      %p76 = scmp.eq.s32.totalorder %s21, 0
      %p77 = por %p75, %p76
      %p78 = scmp.ne.s32.totalorder %s66, %s67
      %p79 = scmp.eq.s32.totalorder %s22, 7
      %p80 = por %p78, %p79
      %p82 = scmp.ne.s32.totalorder %s67, %s81
      %p83 = scmp.eq.s32.totalorder %s22, 0
      %p84 = por %p82, %p83
      %s85 = ssub.s32 %s23, %s35
      %p86 = scmp.eq.s32.totalorder %s85, 0
      %s88 = sadd.s32 %s87, 1
      %s89 = scalar_select %p86, %s87, %s88
      %p92 = pneg %p86
      %p93 = scmp.eq.s32.totalorder %s16, 7
      %p94 = por %p92, %p93
      %p95 = scmp.ne.s32.totalorder %s87, %s90
      %p96 = scmp.eq.s32.totalorder %s16, 0
      %p97 = por %p95, %p96
      %p98 = scmp.ne.s32.totalorder %s87, %s90
      %p99 = scmp.eq.s32.totalorder %s21, 7
      %p100 = por %p98, %p99
      %p101 = scmp.ne.s32.totalorder %s90, %s91
      %p102 = scmp.eq.s32.totalorder %s21, 0
      %p103 = por %p101, %p102
      %p104 = scmp.ne.s32.totalorder %s90, %s91
      %p105 = scmp.eq.s32.totalorder %s22, 7
      %p106 = por %p104, %p105
      %p108 = scmp.ne.s32.totalorder %s91, %s107
      %p109 = scmp.eq.s32.totalorder %s22, 0
      %p110 = por %p108, %p109
      %s111 = ssub.s32 %s23, %s35
      %p112 = scmp.eq.s32.totalorder %s111, 0
      %s114 = sadd.s32 %s113, 1
      %s115 = scalar_select %p112, %s113, %s114
      %p118 = pneg %p112
      %p119 = scmp.eq.s32.totalorder %s16, 7
      %p120 = por %p118, %p119
      %p121 = scmp.ne.s32.totalorder %s113, %s116
      %p122 = scmp.eq.s32.totalorder %s16, 0
      %p123 = por %p121, %p122
      %p124 = scmp.ne.s32.totalorder %s113, %s116
      %p125 = scmp.eq.s32.totalorder %s21, 7
      %p126 = por %p124, %p125
      %p127 = scmp.ne.s32.totalorder %s116, %s117
      %p128 = scmp.eq.s32.totalorder %s21, 0
      %p129 = por %p127, %p128
      %p130 = scmp.ne.s32.totalorder %s116, %s117
      %p131 = scmp.eq.s32.totalorder %s22, 7
      %p132 = por %p130, %p131
      %p134 = scmp.ne.s32.totalorder %s117, %s133
      %p135 = scmp.eq.s32.totalorder %s22, 0
      %p136 = por %p134, %p135
      %p137 = scmp.le.s32.totalorder 1, %s16
      %p138 = scmp.lt.s32.totalorder %s16, 9
      %p139 = pnand %p137, %p138
      %p140 = pneg %p139
      // Predicated region
      $region9: #{tpu_custom_call.1} parent=5 // pred_check
        _
      $region10: #{tpu_custom_call.1} parent=5 // pred_check_branch
        %142 = sbr.rel (%p139) target = $region12
      $region11: #{tpu_custom_call.1} parent=5 // pred_region
        %s143 = ssub.s32 %s16, 1
        // Predicated region
        $region13: #{tpu_custom_call.1} parent=11 // pred_check
          %p144 = pneg %p77
        $region14: #{tpu_custom_call.1} parent=11 // pred_check_branch
          %146 = sbr.rel (%p144) target = $region16
        $region15: #{tpu_custom_call.1} parent=11 // pred_region
          _
        $region16: #{tpu_custom_call.1} parent=11 // pred_fallthru
          _
      $region12: #{tpu_custom_call.1} parent=5 // pred_fallthru
        _
      %p147 = scmp.lt.s32.totalorder %s16, 8
      // Predicated region
      $region17: #{tpu_custom_call.1} parent=5 // pred_check
        %p148 = pneg %p147
      $region18: #{tpu_custom_call.1} parent=5 // pred_check_branch
        %150 = sbr.rel (%p148) target = $region20
      $region19: #{tpu_custom_call.1} parent=5 // pred_region
        // Predicated region
        $region21: #{tpu_custom_call.1} parent=19 // pred_check
          %p151 = pneg %p50
        $region22: #{tpu_custom_call.1} parent=19 // pred_check_branch
          %153 = sbr.rel (%p151) target = $region24
        $region23: #{tpu_custom_call.1} parent=19 // pred_region
          %s154 = smul.u32 16, %s24
          %p155 = scmp.lt.s32.totalorder %s23, 1
          %s156 = scalar_select %p155, %s23, 1
          %p157 = scmp.lt.s32.totalorder %s154, 63
          %s158 = scalar_select %p157, %s154, 63
          %s159 = smul.addr %s156, 64
          %s160 = sadd.s32 %s158, %s159
          %s161 = smul.addr %s160, 8
          %s162 = scalar_lea.vmem %s0, %s161
          %s163 = smul.u32 16, %s24
        $region24: #{tpu_custom_call.1} parent=19 // pred_fallthru
          _
      $region20: #{tpu_custom_call.1} parent=5 // pred_fallthru
        _
      %p164 = scmp.le.s32.totalorder 1, %s16
      %p165 = scmp.lt.s32.totalorder %s16, 9
      %p166 = pnand %p164, %p165
      %p167 = pneg %p166
      // Predicated region
      $region25: #{tpu_custom_call.1} parent=5 // pred_check
        _
      $region26: #{tpu_custom_call.1} parent=5 // pred_check_branch
        %169 = sbr.rel (%p166) target = $region28
      $region27: #{tpu_custom_call.1} parent=5 // pred_region
        %s170 = ssub.s32 %s16, 1
        %s171 = smul.u32 16, %s26
        %p172 = scmp.lt.s32.totalorder %s25, 1
        %s173 = scalar_select %p172, %s25, 1
        %p174 = scmp.lt.s32.totalorder %s171, 63
        %s175 = scalar_select %p174, %s171, 63
        %s176 = smul.addr %s173, 64
        %s177 = sadd.s32 %s175, %s176
        %s178 = smul.addr %s177, 8
        %s179 = scalar_lea.vmem %s0, %s178
        %p180 = pneg %p56
        %p181 = pneg %p53
        %p182 = pneg %p77
        %p183 = pneg %p74
        %p184 = pneg %p103
        %p185 = pneg %p100
        %s186 = sand.u32 %s90, 1
        %s187 = scalar_lea.sflag [#allocation3], %s186
        %s188 = sand.u32 %s90, 1
        %s189 = smul.addr %s188, 8
        %s190 = scalar_lea.vmem [#allocation2], %s189
        %p191 = pneg %p129
        %p192 = pneg %p126
        %s193 = sand.u32 %s116, 1
        %s194 = scalar_lea.sflag [#allocation5], %s193
        %s195 = sand.u32 %s116, 1
        %s196 = smul.addr %s195, 8
        %s197 = scalar_lea.vmem [#allocation4], %s196
        %s198 = smul.u32 16, %s26
        %p199 = scmp.lt.s32.totalorder %s25, 1
        %s200 = scalar_select %p199, %s25, 1
        %p201 = scmp.lt.s32.totalorder %s198, 63
        %s202 = scalar_select %p201, %s198, 63
        %s203 = smul.addr %s200, 64
        %s204 = sadd.s32 %s202, %s203
        %s205 = smul.addr %s204, 8
        %s206 = scalar_lea.vmem %s0, %s205
        %s207 = smul.u32 16, %s26
        %p208 = scmp.eq.s32.totalorder %s26, 0
        // Predicated region
        $region29: #{tpu_custom_call.1} parent=27 // pred_check
          %p209 = pneg %p208
        $region30: #{tpu_custom_call.1} parent=27 // pred_check_branch
          %211 = sbr.rel (%p209) target = $region32
        $region31: #{tpu_custom_call.1} parent=27 // pred_region
          %212 = vst [vmem:[%s190] sm:$0xff] 0.0
          %213 = vst [vmem:[%s197] sm:$0xff] 0.0
        $region32: #{tpu_custom_call.1} parent=27 // pred_fallthru
          _
        %v214 = vld [vmem:[%s206] sm:$0xff]
        %v215 = vld [vmem:[%s206 + $0x8] sm:$0xff]
        %v216 = vld [vmem:[%s206 + $0x10] sm:$0xff]
        %v217 = vld [vmem:[%s206 + $0x18] sm:$0xff]
        %v218 = vld [vmem:[%s206 + $0x20] sm:$0xff]
        %v219 = vld [vmem:[%s206 + $0x28] sm:$0xff]
        %v220 = vld [vmem:[%s206 + $0x30] sm:$0xff]
        %v221 = vld [vmem:[%s206 + $0x38] sm:$0xff]
        %v222 = vld [vmem:[%s206 + $0x40] sm:$0xff]
        %v223 = vld [vmem:[%s206 + $0x48] sm:$0xff]
        %v224 = vld [vmem:[%s206 + $0x50] sm:$0xff]
        %v225 = vld [vmem:[%s206 + $0x58] sm:$0xff]
        %v226 = vld [vmem:[%s206 + $0x60] sm:$0xff]
        %v227 = vld [vmem:[%s206 + $0x68] sm:$0xff]
        %v228 = vld [vmem:[%s206 + $0x70] sm:$0xff]
        %v229 = vld [vmem:[%s206 + $0x78] sm:$0xff]
        %v230 = vld [vmem:[%s1] sm:$0xff]
        %vm231 = vcmask 64512
        %v233 = vsel %vm231, %v214, 0
        %v236 = vsel %vm231, %v215, 0
        %v239 = vsel %vm231, %v216, 0
        %v242 = vsel %vm231, %v217, 0
        %v245 = vsel %vm231, %v218, 0
        %v248 = vsel %vm231, %v219, 0
        %v251 = vsel %vm231, %v220, 0
        %v254 = vsel %vm231, %v221, 0
        %v257 = vsel %vm231, %v222, 0
        %v260 = vsel %vm231, %v223, 0
        %v263 = vsel %vm231, %v224, 0
        %v266 = vsel %vm231, %v225, 0
        %v269 = vsel %vm231, %v226, 0
        %v272 = vsel %vm231, %v227, 0
        %v275 = vsel %vm231, %v228, 0
        %v278 = vsel %vm231, %v229, 0
        %280 = vmatprep.subr.mxu0 0.0
        %281 = vmatpush1.msra.mxu0 %v230
        %282 = vmatprep.subr.mxu0 0.0
        %283 = vmatpush1.msra.mxu0 0.0
        %284 = vmatprep.subr.mxu0 0.0
        %285 = vmatpush1.msra.mxu0 0.0
        %286 = vmatprep.subr.mxu0 0.0
        %287 = vmatpush1.msra.mxu0 0.0
        %288 = vmatprep.subr.mxu0 0.0
        %289 = vmatpush1.msra.mxu0 0.0
        %290 = vmatprep.subr.mxu0 0.0
        %291 = vmatpush1.msra.mxu0 0.0
        %292 = vmatprep.subr.mxu0 0.0
        %293 = vmatpush1.msra.mxu0 0.0
        %294 = vmatprep.subr.mxu0 0.0
        %295 = vmatpush1.msra.mxu0 0.0
        %296 = vmatprep.subr.mxu0 0.0
        %297 = vmatpush1.msra.mxu0 0.0
        %298 = vmatprep.subr.mxu0 0.0
        %299 = vmatpush1.msra.mxu0 0.0
        %300 = vmatprep.subr.mxu0 0.0
        %301 = vmatpush1.msra.mxu0 0.0
        %302 = vmatprep.subr.mxu0 0.0
        %303 = vmatpush1.msra.mxu0 0.0
        %304 = vmatprep.subr.mxu0 0.0
        %305 = vmatpush1.msra.mxu0 0.0
        %306 = vmatprep.subr.mxu0 0.0
        %307 = vmatpush1.msra.mxu0 0.0
        %308 = vmatprep.subr.mxu0 0.0
        %309 = vmatpush1.msra.mxu0 0.0
        %310 = vmatprep.subr.mxu0 0.0
        %311 = vmatpush1.msra.mxu0 0.0
        %312 = vmatprep.subr.mxu0 0.0
        %313 = vmatpush1.msra.mxu0 0.0
        %314 = vmatprep.subr.mxu0 0.0
        %315 = vmatpush1.msra.mxu0 0.0
        %316 = vmatprep.subr.mxu0 0.0
        %317 = vmatpush1.msra.mxu0 0.0
        %318 = vmatprep.subr.mxu0 0.0
        %319 = vmatpush1.msra.mxu0 0.0
        %320 = vmatprep.subr.mxu0 0.0
        %321 = vmatpush1.msra.mxu0 0.0
        %322 = vmatprep.subr.mxu0 0.0
        %323 = vmatpush1.msra.mxu0 0.0
        %324 = vmatprep.subr.mxu0 0.0
        %325 = vmatpush1.msra.mxu0 0.0
        %326 = vmatprep.subr.mxu0 0.0
        %327 = vmatpush1.msra.mxu0 0.0
        %328 = vmatprep.subr.mxu0 0.0
        %329 = vmatpush1.msra.mxu0 0.0
        %330 = vmatprep.subr.mxu0 0.0
        %331 = vmatpush1.msra.mxu0 0.0
        %332 = vmatprep.subr.mxu0 0.0
        %333 = vmatpush1.msra.mxu0 0.0
        %334 = vmatprep.subr.mxu0 0.0
        %335 = vmatpush1.msra.mxu0 0.0
        %336 = vmatprep.subr.mxu0 0.0
        %337 = vmatpush1.msra.mxu0 0.0
        %338 = vmatprep.subr.mxu0 0.0
        %339 = vmatpush1.msra.mxu0 0.0
        %340 = vmatprep.subr.mxu0 0.0
        %341 = vmatpush1.msra.mxu0 0.0
        %342 = vmatprep.subr.mxu0 0.0
        %343 = vmatpush1.msra.mxu0 0.0
        %344 = vmatprep.mubr.f32.mxu0 0.0
        %345 = vmatmul.mubr.f32.gmra.mrb[0].mxu0 %v233
        %v346 = vpop.f32.mrb[0].mxu0
        %v347 = vadd.f32 0.0, %v346
        %v348 = vpop.f32.mrb[0].mxu0
        %349 = vmatprep.mubr.f32.mxu0 0.0
        %350 = vmatmul.mubr.f32.gmra.mrb[0].mxu0 %v236
        %v351 = vpop.f32.mrb[0].mxu0
        %v352 = vadd.f32 0.0, %v351
        %v353 = vpop.f32.mrb[0].mxu0
        %354 = vmatprep.mubr.f32.mxu0 0.0
        %355 = vmatmul.mubr.f32.gmra.mrb[0].mxu0 %v239
        %v356 = vpop.f32.mrb[0].mxu0
        %v357 = vadd.f32 0.0, %v356
        %v358 = vpop.f32.mrb[0].mxu0
        %359 = vmatprep.mubr.f32.mxu0 0.0
        %360 = vmatmul.mubr.f32.gmra.mrb[0].mxu0 %v242
        %v361 = vpop.f32.mrb[0].mxu0
        %v362 = vadd.f32 0.0, %v361
        %v363 = vpop.f32.mrb[0].mxu0
        %364 = vmatprep.mubr.f32.mxu0 0.0
        %365 = vmatmul.mubr.f32.gmra.mrb[0].mxu0 %v245
        %v366 = vpop.f32.mrb[0].mxu0
        %v367 = vadd.f32 0.0, %v366
        %v368 = vpop.f32.mrb[0].mxu0
        %369 = vmatprep.mubr.f32.mxu0 0.0
        %370 = vmatmul.mubr.f32.gmra.mrb[0].mxu0 %v248
        %v371 = vpop.f32.mrb[0].mxu0
        %v372 = vadd.f32 0.0, %v371
        %v373 = vpop.f32.mrb[0].mxu0
        %374 = vmatprep.mubr.f32.mxu0 0.0
        %375 = vmatmul.mubr.f32.gmra.mrb[0].mxu0 %v251
        %v376 = vpop.f32.mrb[0].mxu0
        %v377 = vadd.f32 0.0, %v376
        %v378 = vpop.f32.mrb[0].mxu0
        %379 = vmatprep.mubr.f32.mxu0 0.0
        %380 = vmatmul.mubr.f32.gmra.mrb[0].mxu0 %v254
        %v381 = vpop.f32.mrb[0].mxu0
        %v382 = vadd.f32 0.0, %v381
        %v383 = vpop.f32.mrb[0].mxu0
        %384 = vmatprep.mubr.f32.mxu0 0.0
        %385 = vmatmul.mubr.f32.gmra.mrb[0].mxu0 %v257
        %v386 = vpop.f32.mrb[0].mxu0
        %v387 = vadd.f32 0.0, %v386
        %v388 = vpop.f32.mrb[0].mxu0
        %389 = vmatprep.mubr.f32.mxu0 0.0
        %390 = vmatmul.mubr.f32.gmra.mrb[0].mxu0 %v260
        %v391 = vpop.f32.mrb[0].mxu0
        %v392 = vadd.f32 0.0, %v391
        %v393 = vpop.f32.mrb[0].mxu0
        %394 = vmatprep.mubr.f32.mxu0 0.0
        %395 = vmatmul.mubr.f32.gmra.mrb[0].mxu0 %v263
        %v396 = vpop.f32.mrb[0].mxu0
        %v397 = vadd.f32 0.0, %v396
        %v398 = vpop.f32.mrb[0].mxu0
        %399 = vmatprep.mubr.f32.mxu0 0.0
        %400 = vmatmul.mubr.f32.gmra.mrb[0].mxu0 %v266
        %v401 = vpop.f32.mrb[0].mxu0
        %v402 = vadd.f32 0.0, %v401
        %v403 = vpop.f32.mrb[0].mxu0
        %404 = vmatprep.mubr.f32.mxu0 0.0
        %405 = vmatmul.mubr.f32.gmra.mrb[0].mxu0 %v269
        %v406 = vpop.f32.mrb[0].mxu0
        %v407 = vadd.f32 0.0, %v406
        %v408 = vpop.f32.mrb[0].mxu0
        %409 = vmatprep.mubr.f32.mxu0 0.0
        %410 = vmatmul.mubr.f32.gmra.mrb[0].mxu0 %v272
        %v411 = vpop.f32.mrb[0].mxu0
        %v412 = vadd.f32 0.0, %v411
        %v413 = vpop.f32.mrb[0].mxu0
        %414 = vmatprep.mubr.f32.mxu0 0.0
        %415 = vmatmul.mubr.f32.gmra.mrb[0].mxu0 %v275
        %v416 = vpop.f32.mrb[0].mxu0
        %v417 = vadd.f32 0.0, %v416
        %v418 = vpop.f32.mrb[0].mxu0
        %419 = vmatprep.mubr.f32.mxu0 0.0
        %420 = vmatmul.mubr.f32.gmra.mrb[0].mxu0 %v278
        %v421 = vpop.f32.mrb[0].mxu0
        %v422 = vadd.f32 0.0, %v421
        %v423 = vpop.f32.mrb[0].mxu0
        %424 = vdwg.mxu0
        %s425 = smul.u32 %s26, 128
        %v426 = vlaneseq
        %v427 = vshrl.u32 %v426, 7
        %v428 = vadd.s32 %v427, 8
        %v429 = vadd.s32 %v427, 16
        %v430 = vadd.s32 %v427, 24
        %v431 = vadd.s32 %v427, 32
        %v432 = vadd.s32 %v427, 40
        %v433 = vadd.s32 %v427, 48
        %v434 = vadd.s32 %v427, 56
        %v435 = vadd.s32 %v427, 64
        %v436 = vadd.s32 %v427, 72
        %v437 = vadd.s32 %v427, 80
        %v438 = vadd.s32 %v427, 88
        %v439 = vadd.s32 %v427, 96
        %v440 = vadd.s32 %v427, 104
        %v441 = vadd.s32 %v427, 112
        %v442 = vadd.s32 %v427, 120
        %v443 = vstv %s425
        %v444 = vadd.s32 %v443, %v427
        %v445 = vadd.s32 %v443, %v428
        %v446 = vadd.s32 %v443, %v429
        %v447 = vadd.s32 %v443, %v430
        %v448 = vadd.s32 %v443, %v431
        %v449 = vadd.s32 %v443, %v432
        %v450 = vadd.s32 %v443, %v433
        %v451 = vadd.s32 %v443, %v434
        %v452 = vadd.s32 %v443, %v435
        %v453 = vadd.s32 %v443, %v436
        %v454 = vadd.s32 %v443, %v437
        %v455 = vadd.s32 %v443, %v438
        %v456 = vadd.s32 %v443, %v439
        %v457 = vadd.s32 %v443, %v440
        %v458 = vadd.s32 %v443, %v441
        %v459 = vadd.s32 %v443, %v442
        %vm460 = vcmp.lt.s32.totalorder %v444, 511
        %vm461 = vcmp.lt.s32.totalorder %v445, 511
        %vm462 = vcmp.lt.s32.totalorder %v446, 511
        %vm463 = vcmp.lt.s32.totalorder %v447, 511
        %vm464 = vcmp.lt.s32.totalorder %v448, 511
        %vm465 = vcmp.lt.s32.totalorder %v449, 511
        %vm466 = vcmp.lt.s32.totalorder %v450, 511
        %vm467 = vcmp.lt.s32.totalorder %v451, 511
        %vm468 = vcmp.lt.s32.totalorder %v452, 511
        %vm469 = vcmp.lt.s32.totalorder %v453, 511
        %vm470 = vcmp.lt.s32.totalorder %v454, 511
        %vm471 = vcmp.lt.s32.totalorder %v455, 511
        %vm472 = vcmp.lt.s32.totalorder %v456, 511
        %vm473 = vcmp.lt.s32.totalorder %v457, 511
        %vm474 = vcmp.lt.s32.totalorder %v458, 511
        %vm475 = vcmp.lt.s32.totalorder %v459, 511
        %v476 = vsel %vm460, 1, 0
        %v477 = vsel %vm461, 1, 0
        %v478 = vsel %vm462, 1, 0
        %v479 = vsel %vm463, 1, 0
        %v480 = vsel %vm464, 1, 0
        %v481 = vsel %vm465, 1, 0
        %v482 = vsel %vm466, 1, 0
        %v483 = vsel %vm467, 1, 0
        %v484 = vsel %vm468, 1, 0
        %v485 = vsel %vm469, 1, 0
        %v486 = vsel %vm470, 1, 0
        %v487 = vsel %vm471, 1, 0
        %v488 = vsel %vm472, 1, 0
        %v489 = vsel %vm473, 1, 0
        %v490 = vsel %vm474, 1, 0
        %v491 = vsel %vm475, 1, 0
        %vm492 = vcmp.eq.s32.totalorder %v476, 1
        %vm493 = vcmp.eq.s32.totalorder %v477, 1
        %vm494 = vcmp.eq.s32.totalorder %v478, 1
        %vm495 = vcmp.eq.s32.totalorder %v479, 1
        %vm496 = vcmp.eq.s32.totalorder %v480, 1
        %vm497 = vcmp.eq.s32.totalorder %v481, 1
        %vm498 = vcmp.eq.s32.totalorder %v482, 1
        %vm499 = vcmp.eq.s32.totalorder %v483, 1
        %vm500 = vcmp.eq.s32.totalorder %v484, 1
        %vm501 = vcmp.eq.s32.totalorder %v485, 1
        %vm502 = vcmp.eq.s32.totalorder %v486, 1
        %vm503 = vcmp.eq.s32.totalorder %v487, 1
        %vm504 = vcmp.eq.s32.totalorder %v488, 1
        %vm505 = vcmp.eq.s32.totalorder %v489, 1
        %vm506 = vcmp.eq.s32.totalorder %v490, 1
        %vm507 = vcmp.eq.s32.totalorder %v491, 1
        %v508 = vsel %vm492, %v347, 0.0
        %v509 = vsel %vm493, %v352, 0.0
        %v510 = vsel %vm494, %v357, 0.0
        %v511 = vsel %vm495, %v362, 0.0
        %v512 = vsel %vm496, %v367, 0.0
        %v513 = vsel %vm497, %v372, 0.0
        %v514 = vsel %vm498, %v377, 0.0
        %v515 = vsel %vm499, %v382, 0.0
        %v516 = vsel %vm500, %v387, 0.0
        %v517 = vsel %vm501, %v392, 0.0
        %v518 = vsel %vm502, %v397, 0.0
        %v519 = vsel %vm503, %v402, 0.0
        %v520 = vsel %vm504, %v407, 0.0
        %v521 = vsel %vm505, %v412, 0.0
        %v522 = vsel %vm506, %v417, 0.0
        %v523 = vsel %vm507, %v422, 0.0
        %v524 = vadd.f32 %v508, %v509
        %v525 = vadd.f32 %v524, %v510
        %v526 = vadd.f32 %v525, %v511
        %v527 = vadd.f32 %v526, %v512
        %v528 = vadd.f32 %v527, %v513
        %v529 = vadd.f32 %v528, %v514
        %v530 = vadd.f32 %v529, %v515
        %v531 = vadd.f32 %v530, %v516
        %v532 = vadd.f32 %v531, %v517
        %v533 = vadd.f32 %v532, %v518
        %v534 = vadd.f32 %v533, %v519
        %v535 = vadd.f32 %v534, %v520
        %v536 = vadd.f32 %v535, %v521
        %v537 = vadd.f32 %v536, %v522
        %v538 = vadd.f32 %v537, %v523
        %v539 = vrot.slane %v538, 4
        %v540 = vadd.f32 %v538, %v539
        %v541 = vrot.slane %v540, 2
        %v542 = vadd.f32 %v540, %v541
        %v543 = vrot.slane %v542, 1
        %v544 = vadd.f32 %v542, %v543
        %v545 = vmul.f32 %v508, %v508
        %v546 = vmul.f32 %v509, %v509
        %v547 = vmul.f32 %v510, %v510
        %v548 = vmul.f32 %v511, %v511
        %v549 = vmul.f32 %v512, %v512
        %v550 = vmul.f32 %v513, %v513
        %v551 = vmul.f32 %v514, %v514
        %v552 = vmul.f32 %v515, %v515
        %v553 = vmul.f32 %v516, %v516
        %v554 = vmul.f32 %v517, %v517
        %v555 = vmul.f32 %v518, %v518
        %v556 = vmul.f32 %v519, %v519
        %v557 = vmul.f32 %v520, %v520
        %v558 = vmul.f32 %v521, %v521
        %v559 = vmul.f32 %v522, %v522
        %v560 = vmul.f32 %v523, %v523
        %v561 = vadd.f32 %v545, %v546
        %v562 = vadd.f32 %v561, %v547
        %v563 = vadd.f32 %v562, %v548
        %v564 = vadd.f32 %v563, %v549
        %v565 = vadd.f32 %v564, %v550
        %v566 = vadd.f32 %v565, %v551
        %v567 = vadd.f32 %v566, %v552
        %v568 = vadd.f32 %v567, %v553
        %v569 = vadd.f32 %v568, %v554
        %v570 = vadd.f32 %v569, %v555
        %v571 = vadd.f32 %v570, %v556
        %v572 = vadd.f32 %v571, %v557
        %v573 = vadd.f32 %v572, %v558
        %v574 = vadd.f32 %v573, %v559
        %v575 = vadd.f32 %v574, %v560
        %v576 = vrot.slane %v575, 4
        %v577 = vadd.f32 %v575, %v576
        %v578 = vrot.slane %v577, 2
        %v579 = vadd.f32 %v577, %v578
        %v580 = vrot.slane %v579, 1
        %v581 = vadd.f32 %v579, %v580
        %v582 = vld [vmem:[%s190] sm:$0xff]
        %v583 = vadd.f32 %v582, %v544
        %584 = vst [vmem:[%s190] sm:$0xff] %v583
        %v585 = vld [vmem:[%s197] sm:$0xff]
        %v586 = vadd.f32 %v585, %v581
        %587 = vst [vmem:[%s197] sm:$0xff] %v586
        %s588 = sand.u32 %s90, 1
        %s589 = scalar_lea.sflag [#allocation3], %s588
        %s590 = sand.u32 %s90, 1
        %s591 = smul.addr %s590, 8
        %s592 = scalar_lea.vmem [#allocation2], %s591
        %s593 = sand.u32 %s116, 1
        %s594 = scalar_lea.sflag [#allocation5], %s593
        %s595 = sand.u32 %s116, 1
        %s596 = smul.addr %s595, 8
        %s597 = scalar_lea.vmem [#allocation4], %s596
        // Predicated region
        $region33: #{tpu_custom_call.1} parent=27 // pred_check
          %p598 = pneg %p100
        $region34: #{tpu_custom_call.1} parent=27 // pred_check_branch
          %600 = sbr.rel (%p598) target = $region36
        $region35: #{tpu_custom_call.1} parent=27 // pred_region
          %s602 = ssub.s32 128, 128
          %603 = vsyncadd %s589, %s602
          %s604 = smul.addr %s25, 128
          %s605 = scalar_lea.hbm %s2, %s604
          %s607 = sshll.u32 %s592, 4
          %s608 = int_to_ptr.vmem [resolvable:$true] %s607
          %610 = dma.vmem_to_hbm [thread:$0]  %s608, 128, %s605, %s589
        $region36: #{tpu_custom_call.1} parent=27 // pred_fallthru
          _
        // Predicated region
        $region37: #{tpu_custom_call.1} parent=27 // pred_check
          %p611 = pneg %p126
        $region38: #{tpu_custom_call.1} parent=27 // pred_check_branch
          %613 = sbr.rel (%p611) target = $region40
        $region39: #{tpu_custom_call.1} parent=27 // pred_region
          %s615 = ssub.s32 128, 128
          %616 = vsyncadd %s594, %s615
          %s617 = smul.addr %s25, 128
          %s618 = scalar_lea.hbm %s3, %s617
          %s620 = sshll.u32 %s597, 4
          %s621 = int_to_ptr.vmem [resolvable:$true] %s620
          %623 = dma.vmem_to_hbm [thread:$0]  %s621, 128, %s618, %s594
        $region40: #{tpu_custom_call.1} parent=27 // pred_fallthru
          _
      $region28: #{tpu_custom_call.1} parent=5 // pred_fallthru
        _
      %p624 = scmp.le.s32.totalorder 2, %s16
      // Predicated region
      $region41: #{tpu_custom_call.1} parent=5 // pred_check
        %p625 = pneg %p624
      $region42: #{tpu_custom_call.1} parent=5 // pred_check_branch
        %627 = sbr.rel (%p625) target = $region44
      $region43: #{tpu_custom_call.1} parent=5 // pred_region
        %s628 = ssub.s32 %s16, 2
        // Predicated region
        $region45: #{tpu_custom_call.1} parent=43 // pred_check
          %p629 = pneg %p106
        $region46: #{tpu_custom_call.1} parent=43 // pred_check_branch
          %631 = sbr.rel (%p629) target = $region48
        $region47: #{tpu_custom_call.1} parent=43 // pred_region
          %s632 = sand.u32 %s91, 1
          %s633 = scalar_lea.sflag [#allocation3], %s632
          %s634 = sand.u32 %s91, 1
          %s635 = smul.addr %s634, 8
          %s636 = scalar_lea.vmem [#allocation2], %s635
          %637 = dma.done %s633, 128
        $region48: #{tpu_custom_call.1} parent=43 // pred_fallthru
          _
        // Predicated region
        $region49: #{tpu_custom_call.1} parent=43 // pred_check
          %p638 = pneg %p132
        $region50: #{tpu_custom_call.1} parent=43 // pred_check_branch
          %640 = sbr.rel (%p638) target = $region52
        $region51: #{tpu_custom_call.1} parent=43 // pred_region
          %s641 = sand.u32 %s117, 1
          %s642 = scalar_lea.sflag [#allocation5], %s641
          %s643 = sand.u32 %s117, 1
          %s644 = smul.addr %s643, 8
          %s645 = scalar_lea.vmem [#allocation4], %s644
          %646 = dma.done %s642, 128
        $region52: #{tpu_custom_call.1} parent=43 // pred_fallthru
          _
      $region44: #{tpu_custom_call.1} parent=5 // pred_fallthru
        _
    $region6: #{tpu_custom_call.1} parent=1 // loop_footer
      %s20 = sadd.s32 1, %s16
    $region7: #{tpu_custom_call.1} parent=1 // loop_footer_branch
      %15 = sbr.rel target = $region3
    $region8: #{tpu_custom_call.1} parent=1 // loop_exit
      _
    %647 = vsyncpa [#allocation3], 1
    %s648 = scalar_lea.sflag [#allocation3], 1
    %649 = vsyncpa %s648, 1
    %650 = vsyncpa [#allocation5], 1
    %s651 = scalar_lea.sflag [#allocation5], 1
    %652 = vsyncpa %s651, 1

</llo_original>
